<compile_context>
chip_gen: v7x
topology: tpu7x:2x2x1
jax: 0.10.0
libtpu: 0.0.40
codegen_flags: <defaults>
</compile_context>

<pallas_src>
import functools

import jax
import jax.numpy as jnp
from jax.experimental import pallas as pl
from jax.experimental.pallas import tpu as pltpu


def _se_kernel(x_ref, w1_ref, b1_ref, w2_ref, o_ref, *, hw_true):
    # x_ref block: (Bt, C, HWp)   (zero-padded beyond hw_true along the lane dim)
    inv_hw = 1.0 / float(hw_true)

    # Global average pool over spatial dims (padding is zeros -> sum unaffected).
    pooled = jnp.sum(x_ref[...].astype(jnp.float32), axis=-1) * inv_hw     # (Bt, C)

    # 1x1 conv (C -> C/4, no bias) with BN scale folded into the weight,
    # followed by BN bias + ReLU.   w1_ref: (C, C/4)
    h = jnp.dot(pooled, w1_ref[...], preferred_element_type=jnp.float32)   # (Bt, C/4)
    h = jnp.maximum(h + b1_ref[...], 0.0)

    # 1x1 conv (C/4 -> C, no bias).   w2_ref: (C/4, C)
    a = jnp.dot(h, w2_ref[...], preferred_element_type=jnp.float32)        # (Bt, C)

    # hard-sigmoid: clamp(a + 3, 0, 6) / 6
    a = jnp.clip(a + 3.0, 0.0, 6.0) * (1.0 / 6.0)

    # Scale the input (re-read the ref; the tile is VMEM-resident anyway) and
    # cast back to the output dtype.
    o_ref[...] = (x_ref[...].astype(jnp.float32) * a[:, :, None]).astype(o_ref.dtype)


def _pick_batch_tile(n, bytes_per_img, budget_bytes=4 << 20):
    """Largest divisor of n with block <= budget, keeping >=2 grid steps if n>=2."""
    max_bt = max(1, n // 2) if n >= 2 else 1
    bt = 1
    for d in range(1, max_bt + 1):
        if n % d == 0 and d * bytes_per_img <= budget_bytes:
            bt = d
    return bt


def se_layer(x, w1, w2, bn_scale, bn_bias):
    """x: (N, C, H, W). w1: (C/4, C), w2: (C, C/4), bn_*: (C/4, 1) folded BN.

    Returns x * hard_sigmoid(SE(x)), same shape/dtype as x.
    """
    n, c, h, w = x.shape
    hw = h * w
    hwp = ((hw + 127) // 128) * 128          # lane-dense spatial dim
    c4 = w1.shape[0]

    # Fold BN scale into w1:  scale * (w1 @ pooled) + bias == (scale*w1) @ pooled + bias
    w1t = jnp.transpose(bn_scale.reshape(c4, 1) * w1)   # (C, C/4)
    w2t = jnp.transpose(w2)                              # (C/4, C)
    b1 = bn_bias.reshape(1, c4)                          # (1, C/4)

    x_flat = x.reshape(n, c, hw)
    if hwp != hw:
        x_flat = jnp.pad(x_flat, ((0, 0), (0, 0), (0, hwp - hw)))

    bytes_per_img = c * hwp * x.dtype.itemsize
    bt = _pick_batch_tile(n, bytes_per_img)
    grid = (n // bt,)

    out = pl.pallas_call(
        functools.partial(_se_kernel, hw_true=hw),
        out_shape=jax.ShapeDtypeStruct((n, c, hwp), x.dtype),
        grid_spec=pltpu.PrefetchScalarGridSpec(
            num_scalar_prefetch=0,
            grid=grid,
            in_specs=[
                pl.BlockSpec((bt, c, hwp), lambda i: (i, 0, 0)),   # x
                pl.BlockSpec((c, c4), lambda i: (0, 0)),           # w1 (BN-folded), transposed
                pl.BlockSpec((1, c4), lambda i: (0, 0)),           # BN bias
                pl.BlockSpec((c4, c), lambda i: (0, 0)),           # w2, transposed
            ],
            out_specs=pl.BlockSpec((bt, c, hwp), lambda i: (i, 0, 0)),
        ),
        compiler_params=pltpu.CompilerParams(
            dimension_semantics=("parallel",)),
    )(x_flat, w1t, b1, w2t)

    if hwp != hw:
        out = out[:, :, :hw]
    return out.reshape(n, c, h, w)


def _reference(x, w1, w2, bn_scale, bn_bias):
    pooled = jnp.mean(x, axis=(2, 3), keepdims=True)              # (N, C, 1, 1)
    h = jnp.einsum('oc,ncij->noij', w1, pooled)                   # (N, C/4, 1, 1)
    h = jnp.maximum(h * bn_scale[None, :, :, None] + bn_bias[None, :, :, None], 0.0)
    a = jnp.einsum('oc,ncij->noij', w2, h)                        # (N, C, 1, 1)
    a = jnp.clip(a + 3.0, 0.0, 6.0) / 6.0
    return x * a


if __name__ == "__main__":
    key = jax.random.PRNGKey(0)
    N, C, H, W = 2, 8, 16, 16          # inplanes = 8, inplanes // 4 = 2
    C4 = C // 4

    k_x, k_w1, k_w2, k_g, k_b, k_m, k_v = jax.random.split(key, 7)
    x = jax.random.normal(k_x, (N, C, H, W), dtype=jnp.float32)

    # Conv2d 1x1 weights (out, in, 1, 1) squeezed to (out, in); deterministic init.
    w1 = jax.random.normal(k_w1, (C4, C), dtype=jnp.float32) * 0.2
    w2 = jax.random.normal(k_w2, (C, C4), dtype=jnp.float32) * 0.2

    # BatchNorm2d(C4) parameters (inference mode), folded to scale/bias.
    gamma = 1.0 + 0.1 * jax.random.normal(k_g, (C4,), dtype=jnp.float32)
    beta = 0.1 * jax.random.normal(k_b, (C4,), dtype=jnp.float32)
    running_mean = 0.1 * jax.random.normal(k_m, (C4,), dtype=jnp.float32)
    running_var = jnp.abs(1.0 + 0.1 * jax.random.normal(k_v, (C4,), dtype=jnp.float32))
    eps = 1e-5
    bn_scale = (gamma / jnp.sqrt(running_var + eps)).reshape(C4, 1)
    bn_bias = (beta - running_mean * gamma / jnp.sqrt(running_var + eps)).reshape(C4, 1)

    out = se_layer(x, w1, w2, bn_scale, bn_bias)
    jax.block_until_ready(out)

    ref = _reference(x, w1, w2, bn_scale, bn_bias)
    assert out.shape == x.shape and out.dtype == x.dtype
    assert jnp.allclose(out, ref, atol=1e-5, rtol=1e-5)

    print("KERNEL_OK")
</pallas_src>

<mosaic_0001>
module attributes {stable_mosaic.version = 11 : i64} {
  func.func @_se_kernel(%arg0: i32, %arg1: memref<1x8x256xf32, #tpu.memory_space<vmem>>, %arg2: memref<8x2xf32, #tpu.memory_space<vmem>>, %arg3: memref<1x2xf32, #tpu.memory_space<vmem>>, %arg4: memref<2x8xf32, #tpu.memory_space<vmem>>, %arg5: memref<1x8x256xf32, #tpu.memory_space<vmem>>) attributes {dimension_semantics = [#tpu.dimension_semantics<parallel>], iteration_bounds = array<i64: 2>, scalar_prefetch = 0 : i64, scratch_operands = 0 : i64, tpu.core_type = #tpu.core_type<tc>, window_params = [{transform_indices = @transform_0, window_bounds = array<i64: 1, 8, 256>}, {pipeline_mode = #tpu.pipeline_mode<synchronous>, transform_indices = @transform_1, window_bounds = array<i64: 8, 2>}, {pipeline_mode = #tpu.pipeline_mode<synchronous>, transform_indices = @transform_2, window_bounds = array<i64: 1, 2>}, {pipeline_mode = #tpu.pipeline_mode<synchronous>, transform_indices = @transform_3, window_bounds = array<i64: 2, 8>}, {transform_indices = @transform_4, window_bounds = array<i64: 1, 8, 256>}]} {
    %c0 = arith.constant 0 : index
    %c0_0 = arith.constant 0 : index
    %c0_1 = arith.constant 0 : index
    %0 = vector.load %arg1[%c0, %c0_0, %c0_1] : memref<1x8x256xf32, #tpu.memory_space<vmem>>, vector<1x8x256xf32>
    %cst = arith.constant dense<0.000000e+00> : vector<1x8xf32>
    %1 = vector.multi_reduction <add>, %0, %cst [2] : vector<1x8x256xf32> to vector<1x8xf32>
    %cst_2 = arith.constant 3.906250e-03 : f32
    %2 = vector.broadcast %cst_2 : f32 to vector<1x8xf32>
    %3 = arith.mulf %1, %2 : vector<1x8xf32>
    %c0_3 = arith.constant 0 : index
    %c0_4 = arith.constant 0 : index
    %4 = vector.load %arg2[%c0_3, %c0_4] : memref<8x2xf32, #tpu.memory_space<vmem>>, vector<8x2xf32>
    %cst_5 = arith.constant dense<0.000000e+00> : vector<1x2xf32>
    %5 = tpu.matmul %3, %4, %cst_5 {dimension_numbers = #tpu.dot_dimension_numbers<[1], [0], [0], [1], [0, 0, 1, 1], [], []>} : vector<1x8xf32>, vector<8x2xf32>, vector<1x2xf32> -> vector<1x2xf32>
    %c0_6 = arith.constant 0 : index
    %c0_7 = arith.constant 0 : index
    %6 = vector.load %arg3[%c0_6, %c0_7] : memref<1x2xf32, #tpu.memory_space<vmem>>, vector<1x2xf32>
    %7 = arith.addf %5, %6 : vector<1x2xf32>
    %cst_8 = arith.constant 0.000000e+00 : f32
    %8 = vector.broadcast %cst_8 : f32 to vector<1x2xf32>
    %9 = arith.maximumf %7, %8 : vector<1x2xf32>
    %c0_9 = arith.constant 0 : index
    %c0_10 = arith.constant 0 : index
    %10 = vector.load %arg4[%c0_9, %c0_10] : memref<2x8xf32, #tpu.memory_space<vmem>>, vector<2x8xf32>
    %cst_11 = arith.constant dense<0.000000e+00> : vector<1x8xf32>
    %11 = tpu.matmul %9, %10, %cst_11 {dimension_numbers = #tpu.dot_dimension_numbers<[1], [0], [0], [1], [0, 0, 1, 1], [], []>} : vector<1x2xf32>, vector<2x8xf32>, vector<1x8xf32> -> vector<1x8xf32>
    %cst_12 = arith.constant 3.000000e+00 : f32
    %12 = vector.broadcast %cst_12 : f32 to vector<1x8xf32>
    %13 = arith.addf %11, %12 : vector<1x8xf32>
    %cst_13 = arith.constant 0.000000e+00 : f32
    %cst_14 = arith.constant 6.000000e+00 : f32
    %14 = vector.broadcast %cst_13 : f32 to vector<1x8xf32>
    %15 = arith.maximumf %14, %13 : vector<1x8xf32>
    %16 = vector.broadcast %cst_14 : f32 to vector<1x8xf32>
    %17 = arith.minimumf %16, %15 : vector<1x8xf32>
    %cst_15 = arith.constant 0.166666672 : f32
    %18 = vector.broadcast %cst_15 : f32 to vector<1x8xf32>
    %19 = arith.mulf %17, %18 : vector<1x8xf32>
    %c0_16 = arith.constant 0 : index
    %c0_17 = arith.constant 0 : index
    %c0_18 = arith.constant 0 : index
    %20 = vector.load %arg1[%c0_16, %c0_17, %c0_18] : memref<1x8x256xf32, #tpu.memory_space<vmem>>, vector<1x8x256xf32>
    %21 = vector.shape_cast %19 : vector<1x8xf32> to vector<1x8x1xf32>
    %22 = vector.broadcast %21 : vector<1x8x1xf32> to vector<1x8x256xf32>
    %23 = arith.mulf %20, %22 : vector<1x8x256xf32>
    %c0_19 = arith.constant 0 : index
    %c0_20 = arith.constant 0 : index
    %c0_21 = arith.constant 0 : index
    %24 = vector.load %arg5[%c0_19, %c0_20, %c0_21] : memref<1x8x256xf32, #tpu.memory_space<vmem>>, vector<1x8x256xf32>
    tpu.vector_store %arg5[%c0_19, %c0_20, %c0_21], %23 {strides = array<i32>} : memref<1x8x256xf32, #tpu.memory_space<vmem>>, vector<1x8x256xf32>,
    return
  }
  func.func @transform_0(%arg0: i32) -> (i32, i32, i32) {
    %c0_i32 = arith.constant 0 : i32
    %c0_i32_0 = arith.constant 0 : i32
    %c0_i32_1 = arith.constant 0 : i32
    return %arg0, %c0_i32, %c0_i32_0 : i32, i32, i32
  }
  func.func @transform_1(%arg0: i32) -> (i32, i32) {
    %c0_i32 = arith.constant 0 : i32
    %c0_i32_0 = arith.constant 0 : i32
    %c0_i32_1 = arith.constant 0 : i32
    return %c0_i32, %c0_i32_0 : i32, i32
  }
  func.func @transform_2(%arg0: i32) -> (i32, i32) {
    %c0_i32 = arith.constant 0 : i32
    %c0_i32_0 = arith.constant 0 : i32
    %c0_i32_1 = arith.constant 0 : i32
    return %c0_i32, %c0_i32_0 : i32, i32
  }
  func.func @transform_3(%arg0: i32) -> (i32, i32) {
    %c0_i32 = arith.constant 0 : i32
    %c0_i32_0 = arith.constant 0 : i32
    %c0_i32_1 = arith.constant 0 : i32
    return %c0_i32, %c0_i32_0 : i32, i32
  }
  func.func @transform_4(%arg0: i32) -> (i32, i32, i32) {
    %c0_i32 = arith.constant 0 : i32
    %c0_i32_0 = arith.constant 0 : i32
    %c0_i32_1 = arith.constant 0 : i32
    return %arg0, %c0_i32, %c0_i32_0 : i32, i32, i32
  }
}

</mosaic_0001>

<llo_original>
// kernel: tpu_custom_call.1
$region0: #{tpu_custom_call.1}
  #allocation0 [shape = 'u32[]', space=smem, size = 0x4, offset = 0x4, fixed_abs, tag = 'smem constant byte address 0x4 - core index']
  #allocation1 [shape = 'u32[144,128]{1,0:T(1,128)}', space=vmem, size = 0x12000, scoped, tag = 'internal scratch']
  %s0 = inlined_call_operand.hbm [shape: f32[2,8,256], index: 0, kind: input, shape index: {}]
  %s1 = inlined_call_operand.vmem [shape: f32[8,2], index: 1, kind: input, shape index: {}]
  %s2 = inlined_call_operand.vmem [shape: f32[1,2], index: 2, kind: input, shape index: {}]
  %s3 = inlined_call_operand.vmem [shape: f32[2,8], index: 3, kind: input, shape index: {}]
  %s4 = inlined_call_operand.hbm [shape: f32[2,8,256], index: 4, kind: output, shape index: {}]
  %s5 = sld [smem:[#allocation0]]
  $region53: #{tpu_custom_call.1} parent=0
    _
  %s7 = ssub.s32 1, %s5
  %s8 = scalar_select 0, %s7, %s5
  $region1: #{tpu_custom_call.1} parent=0
    #allocation2 [shape = 'u8[16384]{0}', space=vmem, size = 0x4000, scoped, tag = 'input window, operand 0']
    #allocation3 [shape = 's32[2]{0}', space=sflag, size = 0x8, scoped, tag = 'scoped memory for tpu_custom_call.1']
    #allocation4 [shape = 's32[2]{0}', space=sflag, size = 0x8, scoped, tag = 'scoped memory for tpu_custom_call.1']
    #allocation5 [shape = 'u8[16384]{0}', space=vmem, size = 0x4000, scoped, tag = 'output window, operand 0']
    %9 = vsyncpa [#allocation3], 0
    %s10 = scalar_lea.sflag [#allocation3], 1
    %11 = vsyncpa %s10, 0
    %12 = vsyncpa [#allocation4], 0
    %s13 = scalar_lea.sflag [#allocation4], 1
    %14 = vsyncpa %s13, 0
    loop: start=0, step=1, limit=4
    $region2: #{tpu_custom_call.1} parent=1 // loop_pre_header
      _
    $region3: #{tpu_custom_call.1} parent=1 // loop_header
      %s16 = sphi 0, %s20
      %p17 = scmp.ge.s32.totalorder %s16, 4
      %s26 = sphi 0, %s28
      %s29 = sphi 0, %s26
      %s30 = sphi 0, %s29
      %s46 = sphi 0, %s30
      %s50 = sphi 0, %s50
      %s52 = sphi 0, %s50
      %s53 = sphi 0, %s52
      %s67 = sphi 0, %s53
      %s71 = sphi 0, %s71
      %s73 = sphi 0, %s71
      %s74 = sphi 0, %s73
      %s88 = sphi 0, %s74
      %s92 = sphi 0, %s92
      %s94 = sphi 0, %s92
      %s95 = sphi 0, %s94
      %s109 = sphi 0, %s95
      %s115 = sphi 0, %s117
      %s118 = sphi 0, %s115
      %s119 = sphi 0, %s118
      %s135 = sphi 0, %s119
    $region4: #{tpu_custom_call.1} parent=1 // loop_header_branch
      %19 = sbr.rel (%p17) target = $region8
    $region5: #{tpu_custom_call.1} parent=1 // loop_body
      %s21 = ssub.s32 %s16, 1
      %s22 = ssub.s32 %s16, 2
      %s23 = sadd.s32 %s16, 1
      %s24 = ssub.s32 %s16, %s23
      %p25 = scmp.eq.s32.totalorder %s24, 0
      %s27 = sadd.s32 %s26, 1
      %s28 = scalar_select %p25, %s26, %s27
      %p31 = pneg %p25
      %p32 = scmp.eq.s32.totalorder %s16, 1
      %p33 = por %p31, %p32
      %p34 = scmp.ne.s32.totalorder %s26, %s29
      %p35 = scmp.eq.s32.totalorder %s16, 0
      %p36 = por %p34, %p35
      %p37 = scmp.ne.s32.totalorder %s26, %s29
      %p38 = scmp.eq.s32.totalorder %s21, 1
      %p39 = por %p37, %p38
      %p40 = scmp.ne.s32.totalorder %s29, %s30
      %p41 = scmp.eq.s32.totalorder %s21, 0
      %p42 = por %p40, %p41
      %p43 = scmp.ne.s32.totalorder %s29, %s30
      %p44 = scmp.eq.s32.totalorder %s22, 1
      %p45 = por %p43, %p44
      %p47 = scmp.ne.s32.totalorder %s30, %s46
      %p48 = scmp.eq.s32.totalorder %s22, 0
      %p49 = por %p47, %p48
      %s51 = sadd.s32 %s50, 1
      %p54 = scmp.eq.s32.totalorder %s16, 1
      %p55 = scmp.ne.s32.totalorder %s50, %s52
      %p56 = scmp.eq.s32.totalorder %s16, 0
      %p57 = por %p55, %p56
      %p58 = scmp.ne.s32.totalorder %s50, %s52
      %p59 = scmp.eq.s32.totalorder %s21, 1
      %p60 = por %p58, %p59
      %p61 = scmp.ne.s32.totalorder %s52, %s53
      %p62 = scmp.eq.s32.totalorder %s21, 0
      %p63 = por %p61, %p62
      %p64 = scmp.ne.s32.totalorder %s52, %s53
      %p65 = scmp.eq.s32.totalorder %s22, 1
      %p66 = por %p64, %p65
      %p68 = scmp.ne.s32.totalorder %s53, %s67
      %p69 = scmp.eq.s32.totalorder %s22, 0
      %p70 = por %p68, %p69
      %s72 = sadd.s32 %s71, 1
      %p75 = scmp.eq.s32.totalorder %s16, 1
      %p76 = scmp.ne.s32.totalorder %s71, %s73
      %p77 = scmp.eq.s32.totalorder %s16, 0
      %p78 = por %p76, %p77
      %p79 = scmp.ne.s32.totalorder %s71, %s73
      %p80 = scmp.eq.s32.totalorder %s21, 1
      %p81 = por %p79, %p80
      %p82 = scmp.ne.s32.totalorder %s73, %s74
      %p83 = scmp.eq.s32.totalorder %s21, 0
      %p84 = por %p82, %p83
      %p85 = scmp.ne.s32.totalorder %s73, %s74
      %p86 = scmp.eq.s32.totalorder %s22, 1
      %p87 = por %p85, %p86
      %p89 = scmp.ne.s32.totalorder %s74, %s88
      %p90 = scmp.eq.s32.totalorder %s22, 0
      %p91 = por %p89, %p90
      %s93 = sadd.s32 %s92, 1
      %p96 = scmp.eq.s32.totalorder %s16, 1
      %p97 = scmp.ne.s32.totalorder %s92, %s94
      %p98 = scmp.eq.s32.totalorder %s16, 0
      %p99 = por %p97, %p98
      %p100 = scmp.ne.s32.totalorder %s92, %s94
      %p101 = scmp.eq.s32.totalorder %s21, 1
      %p102 = por %p100, %p101
      %p103 = scmp.ne.s32.totalorder %s94, %s95
      %p104 = scmp.eq.s32.totalorder %s21, 0
      %p105 = por %p103, %p104
      %p106 = scmp.ne.s32.totalorder %s94, %s95
      %p107 = scmp.eq.s32.totalorder %s22, 1
      %p108 = por %p106, %p107
      %p110 = scmp.ne.s32.totalorder %s95, %s109
      %p111 = scmp.eq.s32.totalorder %s22, 0
      %p112 = por %p110, %p111
      %s113 = ssub.s32 %s16, %s23
      %p114 = scmp.eq.s32.totalorder %s113, 0
      %s116 = sadd.s32 %s115, 1
      %s117 = scalar_select %p114, %s115, %s116
      %p120 = pneg %p114
      %p121 = scmp.eq.s32.totalorder %s16, 1
      %p122 = por %p120, %p121
      %p123 = scmp.ne.s32.totalorder %s115, %s118
      %p124 = scmp.eq.s32.totalorder %s16, 0
      %p125 = por %p123, %p124
      %p126 = scmp.ne.s32.totalorder %s115, %s118
      %p127 = scmp.eq.s32.totalorder %s21, 1
      %p128 = por %p126, %p127
      %p129 = scmp.ne.s32.totalorder %s118, %s119
      %p130 = scmp.eq.s32.totalorder %s21, 0
      %p131 = por %p129, %p130
      %p132 = scmp.ne.s32.totalorder %s118, %s119
      %p133 = scmp.eq.s32.totalorder %s22, 1
      %p134 = por %p132, %p133
      %p136 = scmp.ne.s32.totalorder %s119, %s135
      %p137 = scmp.eq.s32.totalorder %s22, 0
      %p138 = por %p136, %p137
      %p139 = scmp.le.s32.totalorder 1, %s16
      %p140 = scmp.lt.s32.totalorder %s16, 3
      %p141 = pnand %p139, %p140
      %p142 = pneg %p141
      // Predicated region
      $region9: #{tpu_custom_call.1} parent=5 // pred_check
        _
      $region10: #{tpu_custom_call.1} parent=5 // pred_check_branch
        %144 = sbr.rel (%p141) target = $region12
      $region11: #{tpu_custom_call.1} parent=5 // pred_region
        %s145 = ssub.s32 %s16, 1
        // Predicated region
        $region13: #{tpu_custom_call.1} parent=11 // pred_check
          %p146 = pneg %p63
        $region14: #{tpu_custom_call.1} parent=11 // pred_check_branch
          %148 = sbr.rel (%p146) target = $region16
        $region15: #{tpu_custom_call.1} parent=11 // pred_region
          _
        $region16: #{tpu_custom_call.1} parent=11 // pred_fallthru
          _
        // Predicated region
        $region17: #{tpu_custom_call.1} parent=11 // pred_check
          %p149 = pneg %p84
        $region18: #{tpu_custom_call.1} parent=11 // pred_check_branch
          %151 = sbr.rel (%p149) target = $region20
        $region19: #{tpu_custom_call.1} parent=11 // pred_region
          _
        $region20: #{tpu_custom_call.1} parent=11 // pred_fallthru
          _
        // Predicated region
        $region21: #{tpu_custom_call.1} parent=11 // pred_check
          %p152 = pneg %p105
        $region22: #{tpu_custom_call.1} parent=11 // pred_check_branch
          %154 = sbr.rel (%p152) target = $region24
        $region23: #{tpu_custom_call.1} parent=11 // pred_region
          _
        $region24: #{tpu_custom_call.1} parent=11 // pred_fallthru
          _
      $region12: #{tpu_custom_call.1} parent=5 // pred_fallthru
        _
      %p155 = scmp.lt.s32.totalorder %s16, 2
      // Predicated region
      $region25: #{tpu_custom_call.1} parent=5 // pred_check
        %p156 = pneg %p155
      $region26: #{tpu_custom_call.1} parent=5 // pred_check_branch
        %158 = sbr.rel (%p156) target = $region28
      $region27: #{tpu_custom_call.1} parent=5 // pred_region
        // Predicated region
        $region29: #{tpu_custom_call.1} parent=27 // pred_check
          %p159 = pneg %p36
        $region30: #{tpu_custom_call.1} parent=27 // pred_check_branch
          %161 = sbr.rel (%p159) target = $region32
        $region31: #{tpu_custom_call.1} parent=27 // pred_region
          %s162 = sand.u32 %s26, 1
          %s163 = scalar_lea.sflag [#allocation3], %s162
          %s164 = sand.u32 %s26, 1
          %s165 = smul.addr %s164, 16
          %s166 = scalar_lea.vmem [#allocation2], %s165
          %s168 = ssub.s32 256, 256
          %169 = vsyncadd %s163, %s168
          %s170 = smul.addr %s16, 2
          %s171 = smul.addr %s170, 128
          %s172 = scalar_lea.hbm %s0, %s171
          %s174 = sshll.u32 %s166, 4
          %s175 = int_to_ptr.vmem [resolvable:$true] %s174
          %177 = dma.hbm_to_vmem [thread:$0]  %s172, 256, %s175, %s163
        $region32: #{tpu_custom_call.1} parent=27 // pred_fallthru
          _
      $region28: #{tpu_custom_call.1} parent=5 // pred_fallthru
        _
      %p178 = scmp.le.s32.totalorder 1, %s16
      %p179 = scmp.lt.s32.totalorder %s16, 3
      %p180 = pnand %p178, %p179
      %p181 = pneg %p180
      // Predicated region
      $region33: #{tpu_custom_call.1} parent=5 // pred_check
        _
      $region34: #{tpu_custom_call.1} parent=5 // pred_check_branch
        %183 = sbr.rel (%p180) target = $region36
      $region35: #{tpu_custom_call.1} parent=5 // pred_region
        %s184 = ssub.s32 %s16, 1
        %s185 = sand.u32 %s29, 1
        %s186 = scalar_lea.sflag [#allocation3], %s185
        %s187 = sand.u32 %s29, 1
        %s188 = smul.addr %s187, 16
        %s189 = scalar_lea.vmem [#allocation2], %s188
        // Predicated region
        $region37: #{tpu_custom_call.1} parent=35 // pred_check
          %p190 = pneg %p42
        $region38: #{tpu_custom_call.1} parent=35 // pred_check_branch
          %192 = sbr.rel (%p190) target = $region40
        $region39: #{tpu_custom_call.1} parent=35 // pred_region
          %193 = dma.done %s186, 256
        $region40: #{tpu_custom_call.1} parent=35 // pred_fallthru
          _
        %s194 = sand.u32 %s29, 1
        %s195 = scalar_lea.sflag [#allocation3], %s194
        %s196 = sand.u32 %s29, 1
        %s197 = smul.addr %s196, 16
        %s198 = scalar_lea.vmem [#allocation2], %s197
        %p199 = pneg %p42
        %p200 = pneg %p39
        %p201 = pneg %p63
        %p202 = pneg %p60
        %p203 = pneg %p84
        %p204 = pneg %p81
        %p205 = pneg %p105
        %p206 = pneg %p102
        %p207 = pneg %p131
        %p208 = pneg %p128
        %s209 = sand.u32 %s118, 1
        %s210 = scalar_lea.sflag [#allocation4], %s209
        %s211 = sand.u32 %s118, 1
        %s212 = smul.addr %s211, 16
        %s213 = scalar_lea.vmem [#allocation5], %s212
        %v214 = vld [vmem:[%s189] sm:$0xff]
        %v215 = vld [vmem:[%s189 + $0x8] sm:$0xff]
        %v216 = vadd.f32 %v214, %v215
        %217 = vadd.xlane.f32.xlu0 %v216
        %v218 = vpop.xlane.xlu0 %217
        %v219 = vmul.f32 %v218, 0.00390625
        %v220 = vld [vmem:[%s1] sm:$0xff]
        %v221 = vld [vmem:[%s2] sm:$0x1]
        %v223 = vlaneseq
        %v224 = vand.u32 %v223, 127
        %v225 = vlaneseq
        %v226 = vshrl.u32 %v225, 7
        %v227 = vsub.s32 %v224, %v226
        %v228 = vrot.slane %v219, %v227
        %vm229 = vcmask 64512
        %v230 = vsel %vm229, %v228, 0
        %232 = vmatprep.subr.mxu0 0.0
        %233 = vmatpush1.msra.mxu0 %v220
        %234 = vmatprep.subr.mxu0 0.0
        %235 = vmatpush1.msra.mxu0 0.0
        %236 = vmatprep.subr.mxu0 0.0
        %237 = vmatpush1.msra.mxu0 0.0
        %238 = vmatprep.subr.mxu0 0.0
        %239 = vmatpush1.msra.mxu0 0.0
        %240 = vmatprep.subr.mxu0 0.0
        %241 = vmatpush1.msra.mxu0 0.0
        %242 = vmatprep.subr.mxu0 0.0
        %243 = vmatpush1.msra.mxu0 0.0
        %244 = vmatprep.subr.mxu0 0.0
        %245 = vmatpush1.msra.mxu0 0.0
        %246 = vmatprep.subr.mxu0 0.0
        %247 = vmatpush1.msra.mxu0 0.0
        %248 = vmatprep.subr.mxu0 0.0
        %249 = vmatpush1.msra.mxu0 0.0
        %250 = vmatprep.subr.mxu0 0.0
        %251 = vmatpush1.msra.mxu0 0.0
        %252 = vmatprep.subr.mxu0 0.0
        %253 = vmatpush1.msra.mxu0 0.0
        %254 = vmatprep.subr.mxu0 0.0
        %255 = vmatpush1.msra.mxu0 0.0
        %256 = vmatprep.subr.mxu0 0.0
        %257 = vmatpush1.msra.mxu0 0.0
        %258 = vmatprep.subr.mxu0 0.0
        %259 = vmatpush1.msra.mxu0 0.0
        %260 = vmatprep.subr.mxu0 0.0
        %261 = vmatpush1.msra.mxu0 0.0
        %262 = vmatprep.subr.mxu0 0.0
        %263 = vmatpush1.msra.mxu0 0.0
        %264 = vmatprep.subr.mxu0 0.0
        %265 = vmatpush1.msra.mxu0 0.0
        %266 = vmatprep.subr.mxu0 0.0
        %267 = vmatpush1.msra.mxu0 0.0
        %268 = vmatprep.subr.mxu0 0.0
        %269 = vmatpush1.msra.mxu0 0.0
        %270 = vmatprep.subr.mxu0 0.0
        %271 = vmatpush1.msra.mxu0 0.0
        %272 = vmatprep.subr.mxu0 0.0
        %273 = vmatpush1.msra.mxu0 0.0
        %274 = vmatprep.subr.mxu0 0.0
        %275 = vmatpush1.msra.mxu0 0.0
        %276 = vmatprep.subr.mxu0 0.0
        %277 = vmatpush1.msra.mxu0 0.0
        %278 = vmatprep.subr.mxu0 0.0
        %279 = vmatpush1.msra.mxu0 0.0
        %280 = vmatprep.subr.mxu0 0.0
        %281 = vmatpush1.msra.mxu0 0.0
        %282 = vmatprep.subr.mxu0 0.0
        %283 = vmatpush1.msra.mxu0 0.0
        %284 = vmatprep.subr.mxu0 0.0
        %285 = vmatpush1.msra.mxu0 0.0
        %286 = vmatprep.subr.mxu0 0.0
        %287 = vmatpush1.msra.mxu0 0.0
        %288 = vmatprep.subr.mxu0 0.0
        %289 = vmatpush1.msra.mxu0 0.0
        %290 = vmatprep.subr.mxu0 0.0
        %291 = vmatpush1.msra.mxu0 0.0
        %292 = vmatprep.subr.mxu0 0.0
        %293 = vmatpush1.msra.mxu0 0.0
        %294 = vmatprep.subr.mxu0 0.0
        %295 = vmatpush1.msra.mxu0 0.0
        %296 = vmatprep.mubr.f32.mxu0 0.0
        %297 = vmatmul.mubr.f32.gmra.mrb[0].mxu0 %v230
        %v298 = vpop.f32.mrb[0].mxu0
        %v299 = vadd.f32 %v221, %v298
        %v300 = vpop.f32.mrb[0].mxu0
        %301 = vdwg.mxu0
        %v302 = vmax.f32 %v299, 0.0
        %v303 = vld [vmem:[%s3] sm:$0x3]
        %vm304 = vcmask 15360
        %v306 = vsel %vm304, %v302, 0
        %vm308 = vcmask 1041408
        %v310 = vsel %vm308, %v303, 0
        %312 = vmatprep.subr.mxu0 0.0
        %313 = vmatpush1.msra.mxu0 %v310
        %314 = vmatprep.subr.mxu0 0.0
        %315 = vmatpush1.msra.mxu0 0.0
        %316 = vmatprep.subr.mxu0 0.0
        %317 = vmatpush1.msra.mxu0 0.0
        %318 = vmatprep.subr.mxu0 0.0
        %319 = vmatpush1.msra.mxu0 0.0
        %320 = vmatprep.subr.mxu0 0.0
        %321 = vmatpush1.msra.mxu0 0.0
        %322 = vmatprep.subr.mxu0 0.0
        %323 = vmatpush1.msra.mxu0 0.0
        %324 = vmatprep.subr.mxu0 0.0
        %325 = vmatpush1.msra.mxu0 0.0
        %326 = vmatprep.subr.mxu0 0.0
        %327 = vmatpush1.msra.mxu0 0.0
        %328 = vmatprep.subr.mxu0 0.0
        %329 = vmatpush1.msra.mxu0 0.0
        %330 = vmatprep.subr.mxu0 0.0
        %331 = vmatpush1.msra.mxu0 0.0
        %332 = vmatprep.subr.mxu0 0.0
        %333 = vmatpush1.msra.mxu0 0.0
        %334 = vmatprep.subr.mxu0 0.0
        %335 = vmatpush1.msra.mxu0 0.0
        %336 = vmatprep.subr.mxu0 0.0
        %337 = vmatpush1.msra.mxu0 0.0
        %338 = vmatprep.subr.mxu0 0.0
        %339 = vmatpush1.msra.mxu0 0.0
        %340 = vmatprep.subr.mxu0 0.0
        %341 = vmatpush1.msra.mxu0 0.0
        %342 = vmatprep.subr.mxu0 0.0
        %343 = vmatpush1.msra.mxu0 0.0
        %344 = vmatprep.subr.mxu0 0.0
        %345 = vmatpush1.msra.mxu0 0.0
        %346 = vmatprep.subr.mxu0 0.0
        %347 = vmatpush1.msra.mxu0 0.0
        %348 = vmatprep.subr.mxu0 0.0
        %349 = vmatpush1.msra.mxu0 0.0
        %350 = vmatprep.subr.mxu0 0.0
        %351 = vmatpush1.msra.mxu0 0.0
        %352 = vmatprep.subr.mxu0 0.0
        %353 = vmatpush1.msra.mxu0 0.0
        %354 = vmatprep.subr.mxu0 0.0
        %355 = vmatpush1.msra.mxu0 0.0
        %356 = vmatprep.subr.mxu0 0.0
        %357 = vmatpush1.msra.mxu0 0.0
        %358 = vmatprep.subr.mxu0 0.0
        %359 = vmatpush1.msra.mxu0 0.0
        %360 = vmatprep.subr.mxu0 0.0
        %361 = vmatpush1.msra.mxu0 0.0
        %362 = vmatprep.subr.mxu0 0.0
        %363 = vmatpush1.msra.mxu0 0.0
        %364 = vmatprep.subr.mxu0 0.0
        %365 = vmatpush1.msra.mxu0 0.0
        %366 = vmatprep.subr.mxu0 0.0
        %367 = vmatpush1.msra.mxu0 0.0
        %368 = vmatprep.subr.mxu0 0.0
        %369 = vmatpush1.msra.mxu0 0.0
        %370 = vmatprep.subr.mxu0 0.0
        %371 = vmatpush1.msra.mxu0 0.0
        %372 = vmatprep.subr.mxu0 0.0
        %373 = vmatpush1.msra.mxu0 0.0
        %374 = vmatprep.subr.mxu0 0.0
        %375 = vmatpush1.msra.mxu0 0.0
        %376 = vmatprep.mubr.f32.mxu0 0.0
        %377 = vmatmul.mubr.f32.gmra.mrb[0].mxu0 %v306
        %v378 = vpop.f32.mrb[0].mxu0
        %v379 = vadd.f32 3.0, %v378
        %v380 = vpop.f32.mrb[0].mxu0
        %381 = vdwg.mxu0
        %v382 = vmax.f32 %v379, 0.0
        %v383 = vmin.f32 %v382, 6.0
        %v384 = vmul.f32 %v383, 0.16666667
        %v385 = vlaneseq
        %v386 = vshrl.u32 %v385, 7
        %v387 = vsub.s32 0, %v386
        %v388 = vrot.slane %v384, %v387
        %390 = vbcast.lane.b32.xlu0 %v388, 256
        %v391 = vpop.permute.xlu0 %390
        %v392 = vmul.f32 %v214, %v391
        %v393 = vmul.f32 %v215, %v391
        %394 = vst [vmem:[%s213] sm:$0xff] %v392
        %395 = vst [vmem:[%s213 + $0x8] sm:$0xff] %v393
        %s396 = sand.u32 %s118, 1
        %s397 = scalar_lea.sflag [#allocation4], %s396
        %s398 = sand.u32 %s118, 1
        %s399 = smul.addr %s398, 16
        %s400 = scalar_lea.vmem [#allocation5], %s399
        // Predicated region
        $region41: #{tpu_custom_call.1} parent=35 // pred_check
          %p401 = pneg %p128
        $region42: #{tpu_custom_call.1} parent=35 // pred_check_branch
          %403 = sbr.rel (%p401) target = $region44
        $region43: #{tpu_custom_call.1} parent=35 // pred_region
          %s405 = ssub.s32 256, 256
          %406 = vsyncadd %s397, %s405
          %s407 = smul.addr %s21, 2
          %s408 = smul.addr %s407, 128
          %s409 = scalar_lea.hbm %s4, %s408
          %s411 = sshll.u32 %s400, 4
          %s412 = int_to_ptr.vmem [resolvable:$true] %s411
          %414 = dma.vmem_to_hbm [thread:$0]  %s412, 256, %s409, %s397
        $region44: #{tpu_custom_call.1} parent=35 // pred_fallthru
          _
      $region36: #{tpu_custom_call.1} parent=5 // pred_fallthru
        _
      %p415 = scmp.le.s32.totalorder 2, %s16
      // Predicated region
      $region45: #{tpu_custom_call.1} parent=5 // pred_check
        %p416 = pneg %p415
      $region46: #{tpu_custom_call.1} parent=5 // pred_check_branch
        %418 = sbr.rel (%p416) target = $region48
      $region47: #{tpu_custom_call.1} parent=5 // pred_region
        %s419 = ssub.s32 %s16, 2
        // Predicated region
        $region49: #{tpu_custom_call.1} parent=47 // pred_check
          %p420 = pneg %p134
        $region50: #{tpu_custom_call.1} parent=47 // pred_check_branch
          %422 = sbr.rel (%p420) target = $region52
        $region51: #{tpu_custom_call.1} parent=47 // pred_region
          %s423 = sand.u32 %s119, 1
          %s424 = scalar_lea.sflag [#allocation4], %s423
          %s425 = sand.u32 %s119, 1
          %s426 = smul.addr %s425, 16
          %s427 = scalar_lea.vmem [#allocation5], %s426
          %428 = dma.done %s424, 256
        $region52: #{tpu_custom_call.1} parent=47 // pred_fallthru
          _
      $region48: #{tpu_custom_call.1} parent=5 // pred_fallthru
        _
    $region6: #{tpu_custom_call.1} parent=1 // loop_footer
      %s20 = sadd.s32 1, %s16
    $region7: #{tpu_custom_call.1} parent=1 // loop_footer_branch
      %15 = sbr.rel target = $region3
    $region8: #{tpu_custom_call.1} parent=1 // loop_exit
      _
    %429 = vsyncpa [#allocation3], 1
    %s430 = scalar_lea.sflag [#allocation3], 1
    %431 = vsyncpa %s430, 1
    %432 = vsyncpa [#allocation4], 1
    %s433 = scalar_lea.sflag [#allocation4], 1
    %434 = vsyncpa %s433, 1

</llo_original>
